<compile_context>
chip_gen: v7x
topology: tpu7x:2x2x1
jax: 0.10.0
libtpu: 0.0.40
codegen_flags: <defaults>
</compile_context>

<pallas_src>
import numpy as np
import jax
import jax.numpy as jnp
from jax.experimental import pallas as pl
from jax.experimental.pallas import tpu as pltpu


# ----------------------------------------------------------------------------
# Sinusoid table — same numbers as PositionalEncoding._get_sinusoid_encoding_table,
# but pre-flattened to (n_position, d_hid*16) and pre-cast to the target dtype.
# ----------------------------------------------------------------------------
def sinusoid_pos_table_flat(n_position, d_hid, dtype=jnp.float32):
    def get_position_angle_vec(position):
        return [np.ones((4, 4)) * (position / np.power(10000, 2 * (hid_j // 2) / d_hid))
                for hid_j in range(d_hid)]

    table = np.array([get_position_angle_vec(p) for p in range(n_position)])  # (P, d_hid, 4, 4)
    table[:, 0::2] = np.sin(table[:, 0::2])
    table[:, 1::2] = np.cos(table[:, 1::2])
    return jnp.asarray(table.reshape(n_position, d_hid * 16), dtype=dtype)     # (P, D)


# ----------------------------------------------------------------------------
# Kernel: x_tile (Bb, tT, D) + pos_tile (tT, D)  -> broadcast add over batch.
# ----------------------------------------------------------------------------
def _add_pos_kernel(x_ref, pos_ref, o_ref):
    o_ref[...] = x_ref[...] + pos_ref[...]          # (Bb,tT,D) + (tT,D) broadcast


def _choose_blocks(B, T, row_bytes):
    """Pick (Bb, tT) so one block per stream is ~4 MiB (v7x-safe, v5e/v6e-friendly)."""
    rows_target = max(8, (4 << 20) // row_bytes)    # rows of D*itemsize bytes each
    if B * T <= rows_target:                        # whole problem in one grid step
        return B, T
    if T <= rows_target:                            # full sequence, several batches/block
        return max(1, rows_target // T), T
    # Long sequence: tile time in multiples of 8 sublanes, one batch per block.
    tT = min(T, max(8, (rows_target // 8) * 8))
    return 1, tT


def positional_encoding(x, pos_flat):
    """x: (B, T, d_hid, 4, 4); pos_flat: (P, d_hid*16) with P >= T."""
    B, T, d_hid, H, W = x.shape
    D = d_hid * H * W                               # 32*4*4 = 512 -> lane-dense
    assert pos_flat.shape[0] >= T and pos_flat.shape[1] == D

    # Free, contiguous reshape / static slice — no transposes, no extra HBM traffic.
    x2 = x.reshape(B, T, D)
    pos2 = pos_flat[:T]
    if pos2.dtype != x.dtype:
        pos2 = pos2.astype(x.dtype)

    itemsize = jnp.dtype(x.dtype).itemsize
    Bb, tT = _choose_blocks(B, T, D * itemsize)

    # Batch is the FASTEST grid axis; pos block index ignores it, so the pos
    # tile stays resident across the inner batch loop (fetched once per t-tile).
    grid = (pl.cdiv(T, tT), pl.cdiv(B, Bb))

    cost = pl.CostEstimate(
        flops=B * T * D,
        transcendentals=0,
        bytes_accessed=(2 * B * T * D + T * D) * itemsize,
    )

    out = pl.pallas_call(
        _add_pos_kernel,
        out_shape=jax.ShapeDtypeStruct((B, T, D), x.dtype),
        grid=grid,
        in_specs=[
            pl.BlockSpec((Bb, tT, D), lambda t, b: (b, t, 0)),   # x tile
            pl.BlockSpec((tT, D),     lambda t, b: (t, 0)),      # pos tile (batch-invariant)
        ],
        out_specs=pl.BlockSpec((Bb, tT, D), lambda t, b: (b, t, 0)),
        compiler_params=pltpu.CompilerParams(
            dimension_semantics=("parallel", "parallel"),
            vmem_limit_bytes=48 << 20,       # blocks sized for <~24 MiB footprint; safe on v5e/v6e/v7x
        ),
        cost_estimate=cost,
    )(x2, pos2)

    return out.reshape(B, T, d_hid, H, W)


# ----------------------------------------------------------------------------
if __name__ == "__main__":
    key = jax.random.PRNGKey(0)

    # --- Small shapes consistent with the module: d_hid=32, 4x4 map, T=6, B=2.
    B, T, d_hid = 2, 6, 32
    n_position = 200

    x = jax.random.normal(key, (B, T, d_hid, 4, 4), dtype=jnp.float32)
    pos_flat = sinusoid_pos_table_flat(n_position, d_hid, dtype=x.dtype)   # (200, 512)

    out = positional_encoding(x, pos_flat)
    out = jax.block_until_ready(out)

    # Reference: forward(x) = x + pos_table[:, :T]  (rebuild 5-D view of the table)
    pos_5d = pos_flat.reshape(n_position, d_hid, 4, 4)[None]
    ref = x + pos_5d[:, :T]
    assert out.shape == (B, T, d_hid, 4, 4), out.shape
    assert bool(jnp.all(jnp.isfinite(out)))
    np.testing.assert_allclose(np.asarray(out), np.asarray(ref), rtol=1e-6, atol=1e-6)

    # --- Second check: exercises the multi-block batch path (pos reused across
    #     batch blocks, partial last batch block masked correctly).
    key2 = jax.random.PRNGKey(1)
    B2, T2, n_pos2 = 10, 256, 256
    x2 = jax.random.normal(key2, (B2, T2, d_hid, 4, 4), dtype=jnp.float32)
    pos_flat2 = sinusoid_pos_table_flat(n_pos2, d_hid, dtype=x2.dtype)
    out2 = jax.block_until_ready(positional_encoding(x2, pos_flat2))
    ref2 = x2 + pos_flat2.reshape(n_pos2, d_hid, 4, 4)[None][:, :T2]
    np.testing.assert_allclose(np.asarray(out2), np.asarray(ref2), rtol=1e-6, atol=1e-6)

    print("KERNEL_OK")
</pallas_src>

<mosaic_0001>
module attributes {stable_mosaic.version = 11 : i64} {
  func.func @_add_pos_kernel(%arg0: i32, %arg1: i32, %arg2: memref<2x6x512xf32, #tpu.memory_space<vmem>>, %arg3: memref<6x512xf32, #tpu.memory_space<vmem>>, %arg4: memref<2x6x512xf32, #tpu.memory_space<vmem>>) attributes {dimension_semantics = [#tpu.dimension_semantics<parallel>, #tpu.dimension_semantics<parallel>], iteration_bounds = array<i64: 1, 1>, scalar_prefetch = 0 : i64, scratch_operands = 0 : i64, tpu.core_type = #tpu.core_type<tc>, window_params = [{transform_indices = @transform_0, window_bounds = array<i64: 2, 6, 512>}, {transform_indices = @transform_1, window_bounds = array<i64: 6, 512>}, {transform_indices = @transform_2, window_bounds = array<i64: 2, 6, 512>}]} {
    %c0 = arith.constant 0 : index
    %c0_0 = arith.constant 0 : index
    %c0_1 = arith.constant 0 : index
    %0 = vector.load %arg2[%c0, %c0_0, %c0_1] : memref<2x6x512xf32, #tpu.memory_space<vmem>>, vector<2x6x512xf32>
    %c0_2 = arith.constant 0 : index
    %c0_3 = arith.constant 0 : index
    %1 = vector.load %arg3[%c0_2, %c0_3] : memref<6x512xf32, #tpu.memory_space<vmem>>, vector<6x512xf32>
    %2 = vector.shape_cast %1 : vector<6x512xf32> to vector<1x6x512xf32>
    %3 = vector.broadcast %2 : vector<1x6x512xf32> to vector<2x6x512xf32>
    %4 = arith.addf %0, %3 : vector<2x6x512xf32>
    %c0_4 = arith.constant 0 : index
    %c0_5 = arith.constant 0 : index
    %c0_6 = arith.constant 0 : index
    %5 = vector.load %arg4[%c0_4, %c0_5, %c0_6] : memref<2x6x512xf32, #tpu.memory_space<vmem>>, vector<2x6x512xf32>
    tpu.vector_store %arg4[%c0_4, %c0_5, %c0_6], %4 {strides = array<i32>} : memref<2x6x512xf32, #tpu.memory_space<vmem>>, vector<2x6x512xf32>,
    return
  }
  func.func @transform_0(%arg0: i32, %arg1: i32) -> (i32, i32, i32) {
    %c0_i32 = arith.constant 0 : i32
    %c0_i32_0 = arith.constant 0 : i32
    return %arg1, %arg0, %c0_i32 : i32, i32, i32
  }
  func.func @transform_1(%arg0: i32, %arg1: i32) -> (i32, i32) {
    %c0_i32 = arith.constant 0 : i32
    %c0_i32_0 = arith.constant 0 : i32
    return %arg0, %c0_i32 : i32, i32
  }
  func.func @transform_2(%arg0: i32, %arg1: i32) -> (i32, i32, i32) {
    %c0_i32 = arith.constant 0 : i32
    %c0_i32_0 = arith.constant 0 : i32
    return %arg1, %arg0, %c0_i32 : i32, i32, i32
  }
}

</mosaic_0001>

<llo_original>
// kernel: tpu_custom_call.1
$region0: #{tpu_custom_call.1}
  #allocation0 [shape = 'u32[]', space=smem, size = 0x4, offset = 0x4, fixed_abs, tag = 'smem constant byte address 0x4 - core index']
  #allocation1 [shape = 'u32[144,128]{1,0:T(1,128)}', space=vmem, size = 0x12000, scoped, tag = 'internal scratch']
  %s0 = inlined_call_operand.vmem [shape: f32[2,6,512], index: 0, kind: input, shape index: {}]
  %s1 = inlined_call_operand.vmem [shape: f32[6,512], index: 1, kind: input, shape index: {}]
  %s2 = inlined_call_operand.vmem [shape: f32[2,6,512], index: 2, kind: output, shape index: {}]
  %s3 = sld [smem:[#allocation0]]
  $region18: #{tpu_custom_call.1} parent=0
    _
  %s5 = ssub.s32 1, %s3
  %s6 = scalar_select 0, %s5, %s3
  // Predicated region
  $region2: #{tpu_custom_call.1} parent=0 // pred_check
    _
  $region3: #{tpu_custom_call.1} parent=0 // pred_check_branch
    %8 = sbr.rel (0) target = $region5
  $region4: #{tpu_custom_call.1} parent=0 // pred_region
    _
  $region5: #{tpu_custom_call.1} parent=0 // pred_fallthru
    _
  // Predicated region
  $region6: #{tpu_custom_call.1} parent=0 // pred_check
    _
  $region7: #{tpu_custom_call.1} parent=0 // pred_check_branch
    %10 = sbr.rel (0) target = $region9
  $region8: #{tpu_custom_call.1} parent=0 // pred_region
    _
  $region9: #{tpu_custom_call.1} parent=0 // pred_fallthru
    _
  %v11 = vld [vmem:[%s0] sm:$0x3f]
  %v12 = vld [vmem:[%s0 + $0x8] sm:$0x3f]
  %v13 = vld [vmem:[%s0 + $0x10] sm:$0x3f]
  %v14 = vld [vmem:[%s0 + $0x18] sm:$0x3f]
  %v15 = vld [vmem:[%s0 + $0x20] sm:$0x3f]
  %v16 = vld [vmem:[%s0 + $0x28] sm:$0x3f]
  %v17 = vld [vmem:[%s0 + $0x30] sm:$0x3f]
  %v18 = vld [vmem:[%s0 + $0x38] sm:$0x3f]
  %v19 = vld [vmem:[%s1] sm:$0x3f]
  %v20 = vld [vmem:[%s1 + $0x8] sm:$0x3f]
  %v21 = vld [vmem:[%s1 + $0x10] sm:$0x3f]
  %v22 = vld [vmem:[%s1 + $0x18] sm:$0x3f]
  %v23 = vadd.f32 %v11, %v19
  %v24 = vadd.f32 %v12, %v20
  %v25 = vadd.f32 %v13, %v21
  %v26 = vadd.f32 %v14, %v22
  %v27 = vadd.f32 %v15, %v19
  %v28 = vadd.f32 %v16, %v20
  %v29 = vadd.f32 %v17, %v21
  %v30 = vadd.f32 %v18, %v22
  %31 = vst [vmem:[%s2] sm:$0x3f] %v23
  %32 = vst [vmem:[%s2 + $0x8] sm:$0x3f] %v24
  %33 = vst [vmem:[%s2 + $0x10] sm:$0x3f] %v25
  %34 = vst [vmem:[%s2 + $0x18] sm:$0x3f] %v26
  %35 = vst [vmem:[%s2 + $0x20] sm:$0x3f] %v27
  %36 = vst [vmem:[%s2 + $0x28] sm:$0x3f] %v28
  %37 = vst [vmem:[%s2 + $0x30] sm:$0x3f] %v29
  %38 = vst [vmem:[%s2 + $0x38] sm:$0x3f] %v30
  // Predicated region
  $region10: #{tpu_custom_call.1} parent=0 // pred_check
    _
  $region11: #{tpu_custom_call.1} parent=0 // pred_check_branch
    %40 = sbr.rel (0) target = $region13
  $region12: #{tpu_custom_call.1} parent=0 // pred_region
    _
  $region13: #{tpu_custom_call.1} parent=0 // pred_fallthru
    _
  // Predicated region
  $region14: #{tpu_custom_call.1} parent=0 // pred_check
    _
  $region15: #{tpu_custom_call.1} parent=0 // pred_check_branch
    %42 = sbr.rel (0) target = $region17
  $region16: #{tpu_custom_call.1} parent=0 // pred_region
    _
  $region17: #{tpu_custom_call.1} parent=0 // pred_fallthru
    _

</llo_original>
